<compile_context>
chip_gen: v6e
topology: v6e:2x2x1
jax: 0.10.0
libtpu: 0.0.40
codegen_flags: <defaults>
</compile_context>

<pallas_src>
import math
import numpy as np
import jax
import jax.numpy as jnp
from jax import lax
from jax.experimental import pallas as pl
from jax.experimental.pallas import tpu as pltpu


def _round_up(x, m):
    return ((x + m - 1) // m) * m


def _vmem_capacity_bytes():
    """Physical VMEM of the attached TPU core (fallback: v7x's 64 MiB)."""
    try:
        info = pltpu.get_tpu_info()
        for name in ("vmem_capacity_bytes", "vmem_bytes", "vmem_size_bytes"):
            v = getattr(info, name, None)
            if v:
                return int(v)
    except Exception:
        pass
    return 64 * 1024 * 1024


def _pick_tiles(T, H, U1p, Vp, out_itemsize, vmem_budget):
    """Pick (tT frames per grid step, tC frames per in-kernel chunk).

    Budgets everything resident per grid step, not just the output tile:
    double-buffered enc/out blocks, resident weights (we/wo/bo) + dec_proj,
    and the per-chunk f32 intermediates (h, h2, logits, exp temps).
    """
    # Frame chunk: bounds f32 intermediates while keeping MXU M >= 256.
    tC = 16
    while tC * U1p < 256 and tC < 256:
        tC *= 2

    resident = 2 * (H * H * 2          # we  (bf16), double-buffered BlockSpec
                    + H * Vp * 2       # wo  (bf16)
                    + Vp * 4           # bo  (f32)
                    + U1p * H * 4)     # dec_proj (f32)
    chunk = tC * U1p * (3 * Vp * 4 + 6 * H)   # logits/s/exp f32 + h f32 + h2 bf16
    per_frame = 2 * (U1p * Vp * out_itemsize  # output block (double-buffered)
                     + 2 * H)                 # enc bf16 block (double-buffered)

    left = vmem_budget - resident - chunk
    tT = tC
    if left > per_frame * tC:
        tT = (left // per_frame) // tC * tC
    tT = max(tC, min(tT, _round_up(T, tC)))
    return int(tT), int(tC)


# --------------------------------------------------------------------------
# Pallas joint kernel wrapper.
#
# concat(e, d) @ Wj.T == e @ Wj[:, :H].T + d @ Wj[:, H:].T, so the concat
# matmul is split: the decoder half is hoisted out of the kernel (computed
# once per call in f32), the encoder half runs on the MXU inside the kernel.
# --------------------------------------------------------------------------
def joint_log_softmax(enc, dec, w_joint, b_joint, w_out, b_out, *,
                      out_dtype=jnp.float32, return_padded=False,
                      t_tile=None):
    """enc [B,T,H], dec [B,U+1,H] (f32) -> log-softmax joint lattice.

    Returns [B, T, U+1, V] in `out_dtype` (default f32 = PyTorch semantics;
    pass jnp.bfloat16 to halve HBM store traffic of the lattice).  With
    `return_padded=True` the padded [B, T_pad, U1p, Vp] lattice is returned
    with no post-kernel slice copy; the consumer must mask pad rows / lanes.
    """
    B, T, H = enc.shape
    U1 = dec.shape[1]
    V = w_out.shape[0]

    U1p = _round_up(U1, 16)        # bf16-native sublane tile (16, 128)
    Vp = _round_up(V, 128)         # lane-dense vocab
    out_itemsize = np.dtype(out_dtype).itemsize

    # ---- VMEM-aware tiling -------------------------------------------------
    vmem_cap = _vmem_capacity_bytes()
    vmem_limit = min(max(int(vmem_cap * 3 // 4), 32 * 1024 * 1024),
                     100 * 1024 * 1024)
    tT, tC = _pick_tiles(T, H, U1p, Vp, out_itemsize, int(vmem_limit * 0.6))
    if t_tile is not None:
        tT = max(tC, _round_up(t_tile, tC))
    T_pad = _round_up(T, tT)
    n_t = T_pad // tT
    n_chunks = tT // tC

    # ---- weight / activation prep (constant-folded under jit) ---------------
    we = w_joint[:, :H].T.astype(jnp.bfloat16)                           # (H, H)
    wo = jnp.zeros((H, Vp), jnp.bfloat16).at[:, :V].set(
        w_out.T.astype(jnp.bfloat16))                                    # (H, Vp)
    bo = jnp.full((1, Vp), -1e30, jnp.float32).at[0, :V].set(
        b_out.astype(jnp.float32))               # pad lanes -> exp() == 0

    # Decoder projection hoisted out of the kernel: computed once, in f32
    # (previously recomputed n_t times per batch element with Wd resident).
    dec_proj = dec.astype(jnp.float32) @ w_joint[:, H:].T + b_joint      # (B,U1,H)
    dec_proj = jnp.zeros((B, U1p, H), jnp.float32).at[:, :U1, :].set(dec_proj)

    enc_p = jnp.zeros((B, T_pad, H), jnp.bfloat16).at[:, :T, :].set(
        enc.astype(jnp.bfloat16))

    # ---- kernel --------------------------------------------------------------
    def kernel(enc_ref, dec_ref, we_ref, wo_ref, bo_ref, out_ref):
        dp = dec_ref[...]             # (U1p, H) f32, joint bias already folded in
        we_v = we_ref[...]
        wo_v = wo_ref[...]
        bo_v = bo_ref[...]

        def chunk(i, carry):
            off = pl.multiple_of(i * tC, tC)
            e = enc_ref[pl.ds(off, tC), :]                               # (tC,H) bf16
            ep = jnp.dot(e, we_v, preferred_element_type=jnp.float32)    # (tC,H) f32
            # full (tC, U1p, H) joint sub-tile: VPU add + EUP tanh
            h = jnp.tanh(ep[:, None, :] + dp[None, :, :])
            h2 = h.reshape(tC * U1p, H).astype(jnp.bfloat16)             # sublane-aligned
            logits = jnp.dot(h2, wo_v,
                             preferred_element_type=jnp.float32) + bo_v  # (tC*U1p,Vp)
            # numerically stable log-softmax over the lane (V) axis
            m = jnp.max(logits, axis=-1, keepdims=True)
            s = logits - m
            lse = jnp.log(jnp.sum(jnp.exp(s), axis=-1, keepdims=True))
            out_ref[pl.ds(off, tC), :, :] = (
                (s - lse).reshape(tC, U1p, Vp).astype(out_ref.dtype))
            return carry

        lax.fori_loop(0, n_chunks, chunk, 0, unroll=(n_chunks <= 8))

    # ---- cost estimate (lets XLA schedule surrounding ops around the call) --
    flops = (2 * B * T_pad * H * H
             + 2 * B * T_pad * U1p * H * Vp
             + 2 * B * T_pad * U1p * H)
    transcendentals = B * T_pad * U1p * (H + Vp)
    bytes_accessed = (B * T_pad * H * 2 + B * U1p * H * 4
                      + H * H * 2 + H * Vp * 2 + Vp * 4
                      + B * T_pad * U1p * Vp * out_itemsize)

    out = pl.pallas_call(
        kernel,
        out_shape=jax.ShapeDtypeStruct((B, T_pad, U1p, Vp), out_dtype),
        grid=(B, n_t),
        in_specs=[
            pl.BlockSpec((None, tT, H), lambda b, t: (b, t, 0)),    # enc tile
            pl.BlockSpec((None, U1p, H), lambda b, t: (b, 0, 0)),   # dec_proj
            pl.BlockSpec((H, H), lambda b, t: (0, 0)),              # we (resident)
            pl.BlockSpec((H, Vp), lambda b, t: (0, 0)),             # wo (resident)
            pl.BlockSpec((1, Vp), lambda b, t: (0, 0)),             # bo
        ],
        out_specs=pl.BlockSpec((None, tT, U1p, Vp), lambda b, t: (b, t, 0, 0)),
        compiler_params=pltpu.CompilerParams(
            # TODO(synk): on v7x, verify with a trace that both TensorCores are
            # active; if not, switch the batch axis to pltpu.CORE_PARALLEL.
            dimension_semantics=("parallel", "parallel"),
            vmem_limit_bytes=vmem_limit,
        ),
        cost_estimate=pl.CostEstimate(flops=flops,
                                      transcendentals=transcendentals,
                                      bytes_accessed=bytes_accessed),
    )(enc_p, dec_proj, we, wo, bo)

    if return_padded:
        # Consumer must mask t >= T, u >= U+1 and vocab lanes >= V.
        return out
    if (T_pad, U1p, Vp) != (T, U1, V):
        out = out[:, :T, :U1, :V]
    return out


# --------------------------------------------------------------------------
# Plain-JAX glue: LSTM stacks, Linear, LayerNorm, embedding (PyTorch semantics)
# (sequential recurrences - kept as lax.scan, not a Pallas target here)
# --------------------------------------------------------------------------
def _lstm_dir(x, w_ih, w_hh, b, reverse=False):
    # x: [B, T, D] -> [B, T, H]; PyTorch gate order i, f, g, o
    B, T, _ = x.shape
    H = w_hh.shape[1]
    xs = jnp.swapaxes(x, 0, 1)                      # [T, B, D]
    if reverse:
        xs = xs[::-1]
    h0 = jnp.zeros((B, H), jnp.float32)
    c0 = jnp.zeros((B, H), jnp.float32)

    def step(carry, x_t):
        h, c = carry
        gates = x_t @ w_ih.T + h @ w_hh.T + b
        i, f, g, o = jnp.split(gates, 4, axis=-1)
        i = jax.nn.sigmoid(i)
        f = jax.nn.sigmoid(f)
        g = jnp.tanh(g)
        o = jax.nn.sigmoid(o)
        c = f * c + i * g
        h = o * jnp.tanh(c)
        return (h, c), h

    _, ys = jax.lax.scan(step, (h0, c0), xs)
    if reverse:
        ys = ys[::-1]
    return jnp.swapaxes(ys, 0, 1)                   # [B, T, H]


def run_lstm(x, layers, bidirectional):
    out = x
    for layer in layers:
        if bidirectional:
            (wf_ih, wf_hh, bf), (wb_ih, wb_hh, bb) = layer
            fwd = _lstm_dir(out, wf_ih, wf_hh, bf, reverse=False)
            bwd = _lstm_dir(out, wb_ih, wb_hh, bb, reverse=True)
            out = jnp.concatenate([fwd, bwd], axis=-1)
        else:
            (w_ih, w_hh, b), = layer
            out = _lstm_dir(out, w_ih, w_hh, b, reverse=False)
    return out


def linear(x, w, b):
    return x @ w.T + b


def layer_norm(x, gamma, beta, eps=1e-5):
    mu = jnp.mean(x, axis=-1, keepdims=True)
    var = jnp.var(x, axis=-1, keepdims=True)
    return (x - mu) / jnp.sqrt(var + eps) * gamma + beta


# --------------------------------------------------------------------------
# Deterministic parameter construction
# --------------------------------------------------------------------------
def _uinit(key, shape, fan):
    bound = 1.0 / math.sqrt(fan)
    return jax.random.uniform(key, shape, jnp.float32, -bound, bound)


def make_lstm_params(key, input_size, hidden, num_layers, bidirectional):
    dirs = 2 if bidirectional else 1
    layers = []
    for l in range(num_layers):
        in_sz = input_size if l == 0 else hidden * dirs
        dparams = []
        for _ in range(dirs):
            key, k1, k2, k3 = jax.random.split(key, 4)
            dparams.append((_uinit(k1, (4 * hidden, in_sz), hidden),
                            _uinit(k2, (4 * hidden, hidden), hidden),
                            _uinit(k3, (4 * hidden,), hidden)))
        layers.append(tuple(dparams))
    return layers, key


def make_params(key, feature_size, hidden, vocab, num_layers):
    p = {}
    p["enc_lstm"], key = make_lstm_params(key, feature_size, hidden,
                                          num_layers, bidirectional=True)
    key, k1, k2 = jax.random.split(key, 3)
    p["encoder_out"] = (_uinit(k1, (hidden, 2 * hidden), 2 * hidden),
                        _uinit(k2, (hidden,), 2 * hidden))

    key, k1 = jax.random.split(key)
    p["dec_emb"] = jax.random.normal(k1, (vocab, vocab - 1), jnp.float32) * 0.1
    p["dec_lstm"], key = make_lstm_params(key, vocab - 1, hidden,
                                          num_layers=1, bidirectional=False)
    key, k1, k2 = jax.random.split(key, 3)
    # TODO(synk): speechbrain RNNLM DNN block assumed to be Linear+LayerNorm+LeakyReLU
    p["dec_dnn"] = (_uinit(k1, (hidden, hidden), hidden),
                    _uinit(k2, (hidden,), hidden))
    p["dec_ln"] = (jnp.ones((hidden,), jnp.float32),
                   jnp.zeros((hidden,), jnp.float32))
    key, k1, k2 = jax.random.split(key, 3)
    p["dec_out"] = (_uinit(k1, (hidden, hidden), hidden),
                    _uinit(k2, (hidden,), hidden))

    key, k1, k2 = jax.random.split(key, 3)
    p["joint_w"] = _uinit(k1, (hidden, 2 * hidden), 2 * hidden)
    p["joint_b"] = _uinit(k2, (hidden,), 2 * hidden)
    key, k1, k2 = jax.random.split(key, 3)
    p["out_w"] = _uinit(k1, (vocab, hidden), hidden)
    p["out_b"] = _uinit(k2, (vocab,), hidden)
    return p


# --------------------------------------------------------------------------
# Transducer forward
# --------------------------------------------------------------------------
def encode_decode(params, x, y, blank_index):
    # encoder:  biLSTM stack -> Linear(2H -> H)
    enc = run_lstm(x, params["enc_lstm"], bidirectional=True)
    enc = linear(enc, *params["encoder_out"])                    # [B, T, H]

    # decoder:  F.pad(y, [1,0], blank) -> Embedding -> LSTM -> DNN -> out
    y_in = jnp.pad(y, ((0, 0), (1, 0)), constant_values=blank_index)
    emb = params["dec_emb"][y_in]                                # [B, U+1, V-1]
    dec = run_lstm(emb, params["dec_lstm"], bidirectional=False)
    dec = linear(dec, *params["dec_dnn"])
    dec = layer_norm(dec, *params["dec_ln"])
    dec = jax.nn.leaky_relu(dec, 0.01)
    dec = linear(dec, *params["dec_out"])                        # [B, U+1, H]
    return enc, dec


def transducer_forward(params, x, y, blank_index):
    enc, dec = encode_decode(params, x, y, blank_index)
    return joint_log_softmax(enc, dec, params["joint_w"], params["joint_b"],
                             params["out_w"], params["out_b"])


def joint_reference(enc, dec, wj, bj, wo, bo):
    B, T, H = enc.shape
    U1 = dec.shape[1]
    xs = jnp.broadcast_to(enc[:, :, None, :], (B, T, U1, H))
    ys = jnp.broadcast_to(dec[:, None, :, :], (B, T, U1, H))
    h = jnp.tanh(jnp.concatenate([xs, ys], axis=-1) @ wj.T + bj)
    logits = h @ wo.T + bo
    return jax.nn.log_softmax(logits, axis=-1)


# --------------------------------------------------------------------------
if __name__ == "__main__":
    # small config
    B, T, FEAT, H, V, U = 2, 8, 16, 32, 8, 5
    NUM_LAYERS, BLANK = 2, 0

    params = make_params(jax.random.PRNGKey(42), FEAT, H, V, NUM_LAYERS)

    kin = jax.random.PRNGKey(0)
    kx, ky = jax.random.split(kin)
    x = jax.random.normal(kx, (B, T, FEAT), jnp.float32)   # acoustic features
    y = jax.random.randint(ky, (B, U), 0, V)                # target tokens

    out = jax.jit(lambda xx, yy: transducer_forward(params, xx, yy, BLANK))(x, y)
    out = jax.block_until_ready(out)
    assert out.shape == (B, T, U + 1, V), out.shape

    # correctness check of the Pallas joint against a pure-JAX f32 reference.
    # Tolerance reflects bf16 MXU operands (accumulation stays f32); if the
    # output feeds beam-search scoring, note this ~1e-2-scale error.
    enc, dec = encode_decode(params, x, y, BLANK)
    ref = joint_reference(enc, dec, params["joint_w"], params["joint_b"],
                          params["out_w"], params["out_b"])
    err = float(jnp.max(jnp.abs(out - ref)))
    if not bool(jnp.allclose(out, ref, atol=5e-2, rtol=5e-2)):
        raise AssertionError(f"Pallas joint mismatch vs reference, max err {err}")

    print("KERNEL_OK")
</pallas_src>

<mosaic_0001>
module attributes {stable_mosaic.version = 11 : i64} {
  func.func @kernel(%arg0: i32, %arg1: i32, %arg2: memref<1x16x32xbf16, #tpu.memory_space<vmem>>, %arg3: memref<1x16x32xf32, #tpu.memory_space<vmem>>, %arg4: memref<32x32xbf16, #tpu.memory_space<vmem>>, %arg5: memref<32x128xbf16, #tpu.memory_space<vmem>>, %arg6: memref<1x128xf32, #tpu.memory_space<vmem>>, %arg7: memref<1x16x16x128xf32, #tpu.memory_space<vmem>>) attributes {dimension_semantics = [#tpu.dimension_semantics<parallel>, #tpu.dimension_semantics<parallel>], iteration_bounds = array<i64: 2, 1>, scalar_prefetch = 0 : i64, scratch_operands = 0 : i64, tpu.core_type = #tpu.core_type<tc>, window_params = [{transform_indices = @transform_0, window_bounds = array<i64: 1, 16, 32>}, {transform_indices = @transform_1, window_bounds = array<i64: 1, 16, 32>}, {pipeline_mode = #tpu.pipeline_mode<synchronous>, transform_indices = @transform_2, window_bounds = array<i64: 32, 32>}, {pipeline_mode = #tpu.pipeline_mode<synchronous>, transform_indices = @transform_3, window_bounds = array<i64: 32, 128>}, {pipeline_mode = #tpu.pipeline_mode<synchronous>, transform_indices = @transform_4, window_bounds = array<i64: 1, 128>}, {transform_indices = @transform_5, window_bounds = array<i64: 1, 16, 16, 128>}]} {
    %c0 = arith.constant 0 : index
    %c0_0 = arith.constant 0 : index
    %c0_1 = arith.constant 0 : index
    %0 = vector.load %arg3[%c0, %c0_0, %c0_1] : memref<1x16x32xf32, #tpu.memory_space<vmem>>, vector<1x16x32xf32>
    %1 = vector.shape_cast %0 : vector<1x16x32xf32> to vector<16x32xf32>
    %c0_2 = arith.constant 0 : index
    %c0_3 = arith.constant 0 : index
    %2 = vector.load %arg4[%c0_2, %c0_3] : memref<32x32xbf16, #tpu.memory_space<vmem>>, vector<32x32xbf16>
    %c0_4 = arith.constant 0 : index
    %c0_5 = arith.constant 0 : index
    %3 = vector.load %arg5[%c0_4, %c0_5] : memref<32x128xbf16, #tpu.memory_space<vmem>>, vector<32x128xbf16>
    %c0_6 = arith.constant 0 : index
    %c0_7 = arith.constant 0 : index
    %4 = vector.load %arg6[%c0_6, %c0_7] : memref<1x128xf32, #tpu.memory_space<vmem>>, vector<1x128xf32>
    %c0_i32 = arith.constant 0 : i32
    %c16_i32 = arith.constant 16 : i32
    %5 = arith.muli %c0_i32, %c16_i32 : i32
    %6 = tpu.assume_multiple %5, 16 : i32
    %c0_8 = arith.constant 0 : index
    %7 = arith.index_cast %6 : i32 to index
    %c0_9 = arith.constant 0 : index
    %8 = vector.load %arg2[%c0_8, %7, %c0_9] : memref<1x16x32xbf16, #tpu.memory_space<vmem>>, vector<1x16x32xbf16>
    %9 = vector.shape_cast %8 : vector<1x16x32xbf16> to vector<16x32xbf16>
    %cst = arith.constant dense<0.000000e+00> : vector<16x32xf32>
    %10 = tpu.matmul %9, %2, %cst {dimension_numbers = #tpu.dot_dimension_numbers<[1], [0], [0], [1], [0, 0, 1, 1], [], []>} : vector<16x32xbf16>, vector<32x32xbf16>, vector<16x32xf32> -> vector<16x32xf32>
    %11 = vector.shape_cast %10 : vector<16x32xf32> to vector<16x1x32xf32>
    %12 = vector.shape_cast %1 : vector<16x32xf32> to vector<1x16x32xf32>
    %13 = vector.broadcast %11 : vector<16x1x32xf32> to vector<16x16x32xf32>
    %14 = vector.broadcast %12 : vector<1x16x32xf32> to vector<16x16x32xf32>
    %15 = arith.addf %13, %14 : vector<16x16x32xf32>
    %16 = math.tanh %15 : vector<16x16x32xf32>
    %17 = vector.shape_cast %16 : vector<16x16x32xf32> to vector<256x32xf32>
    %18 = arith.truncf %17 : vector<256x32xf32> to vector<256x32xbf16>
    %cst_10 = arith.constant dense<0.000000e+00> : vector<256x128xf32>
    %19 = tpu.matmul %18, %3, %cst_10 {dimension_numbers = #tpu.dot_dimension_numbers<[1], [0], [0], [1], [0, 0, 1, 1], [], []>} : vector<256x32xbf16>, vector<32x128xbf16>, vector<256x128xf32> -> vector<256x128xf32>
    %20 = vector.broadcast %4 : vector<1x128xf32> to vector<256x128xf32>
    %21 = arith.addf %19, %20 : vector<256x128xf32>
    %cst_11 = arith.constant dense<0xFF800000> : vector<256xf32>
    %22 = vector.multi_reduction <maximumf>, %21, %cst_11 [1] : vector<256x128xf32> to vector<256xf32>
    %23 = vector.shape_cast %22 : vector<256xf32> to vector<256x1xf32>
    %24 = vector.broadcast %23 : vector<256x1xf32> to vector<256x128xf32>
    %25 = arith.subf %21, %24 : vector<256x128xf32>
    %26 = math.exp %25 : vector<256x128xf32>
    %cst_12 = arith.constant dense<0.000000e+00> : vector<256xf32>
    %27 = vector.multi_reduction <add>, %26, %cst_12 [1] : vector<256x128xf32> to vector<256xf32>
    %28 = vector.shape_cast %27 : vector<256xf32> to vector<256x1xf32>
    %29 = math.log %28 : vector<256x1xf32>
    %30 = vector.broadcast %29 : vector<256x1xf32> to vector<256x128xf32>
    %31 = arith.subf %25, %30 : vector<256x128xf32>
    %32 = vector.shape_cast %31 : vector<256x128xf32> to vector<16x16x128xf32>
    %c0_13 = arith.constant 0 : index
    %33 = arith.index_cast %6 : i32 to index
    %c0_14 = arith.constant 0 : index
    %c0_15 = arith.constant 0 : index
    %34 = vector.load %arg7[%c0_13, %33, %c0_14, %c0_15] : memref<1x16x16x128xf32, #tpu.memory_space<vmem>>, vector<1x16x16x128xf32>
    %35 = vector.shape_cast %34 : vector<1x16x16x128xf32> to vector<16x16x128xf32>
    %36 = vector.shape_cast %32 : vector<16x16x128xf32> to vector<1x16x16x128xf32>
    tpu.vector_store %arg7[%c0_13, %33, %c0_14, %c0_15], %36 {strides = array<i32>} : memref<1x16x16x128xf32, #tpu.memory_space<vmem>>, vector<1x16x16x128xf32>,
    %c1_i32 = arith.constant 1 : i32
    return
  }
  func.func @transform_0(%arg0: i32, %arg1: i32) -> (i32, i32, i32) {
    %c0_i32 = arith.constant 0 : i32
    %c0_i32_0 = arith.constant 0 : i32
    return %arg0, %arg1, %c0_i32 : i32, i32, i32
  }
  func.func @transform_1(%arg0: i32, %arg1: i32) -> (i32, i32, i32) {
    %c0_i32 = arith.constant 0 : i32
    %c0_i32_0 = arith.constant 0 : i32
    %c0_i32_1 = arith.constant 0 : i32
    return %arg0, %c0_i32, %c0_i32_0 : i32, i32, i32
  }
  func.func @transform_2(%arg0: i32, %arg1: i32) -> (i32, i32) {
    %c0_i32 = arith.constant 0 : i32
    %c0_i32_0 = arith.constant 0 : i32
    %c0_i32_1 = arith.constant 0 : i32
    return %c0_i32, %c0_i32_0 : i32, i32
  }
  func.func @transform_3(%arg0: i32, %arg1: i32) -> (i32, i32) {
    %c0_i32 = arith.constant 0 : i32
    %c0_i32_0 = arith.constant 0 : i32
    %c0_i32_1 = arith.constant 0 : i32
    return %c0_i32, %c0_i32_0 : i32, i32
  }
  func.func @transform_4(%arg0: i32, %arg1: i32) -> (i32, i32) {
    %c0_i32 = arith.constant 0 : i32
    %c0_i32_0 = arith.constant 0 : i32
    %c0_i32_1 = arith.constant 0 : i32
    return %c0_i32, %c0_i32_0 : i32, i32
  }
  func.func @transform_5(%arg0: i32, %arg1: i32) -> (i32, i32, i32, i32) {
    %c0_i32 = arith.constant 0 : i32
    %c0_i32_0 = arith.constant 0 : i32
    %c0_i32_1 = arith.constant 0 : i32
    return %arg0, %arg1, %c0_i32, %c0_i32_0 : i32, i32, i32, i32
  }
}

</mosaic_0001>

<llo_original>
// kernel: custom-call.8
$region0: #{custom-call.8}
  %s0 = inlined_call_operand.vmem [shape: bf16[2,32], index: 0, kind: output, shape index: {}]

// kernel: custom-call.9
$region0: #{custom-call.9}
  %s0 = inlined_call_operand.vmem [shape: f32[2,32], index: 0, kind: output, shape index: {}]

// kernel: custom-call.12
$region0: #{custom-call.12}
  %s0 = inlined_call_operand.vmem [shape: bf16[6,2,32], index: 0, kind: output, shape index: {}]

// kernel: _lambda_.1
$region0: #{_lambda_.1}
  #allocation0 [shape = 'u32[]', space=smem, size = 0x4, offset = 0x4, fixed_abs, tag = 'smem constant byte address 0x4 - core index']
  #allocation1 [shape = 'u32[144,128]{1,0:T(1,128)}', space=vmem, size = 0x12000, scoped, tag = 'internal scratch']
  %s0 = inlined_call_operand.vmem [shape: bf16[2,16,32], index: 0, kind: input, shape index: {}]
  %s1 = inlined_call_operand.vmem [shape: f32[2,16,32], index: 1, kind: input, shape index: {}]
  %s2 = inlined_call_operand.vmem [shape: bf16[32,32], index: 2, kind: input, shape index: {}]
  %s3 = inlined_call_operand.vmem [shape: bf16[32,128], index: 3, kind: input, shape index: {}]
  %s4 = inlined_call_operand.vmem [shape: f32[1,128], index: 4, kind: input, shape index: {}]
  %s5 = inlined_call_operand.vmem [shape: f32[2,16,16,128], index: 5, kind: output, shape index: {}]
  %s6 = sld [smem:[#allocation0]]
  $region53: #{_lambda_.1} parent=0
    _
  %s8 = ssub.s32 1, %s6
  %s9 = scalar_select 0, %s8, %s6
  loop: start=0, step=1, limit=4
  $region2: #{_lambda_.1} parent=0 // loop_pre_header
    _
  $region3: #{_lambda_.1} parent=0 // loop_header
    %s11 = sphi 0, %s15
    %p12 = scmp.ge.s32.totalorder %s11, 4
    %s18 = sphi 0, %s30
    %s19 = sphi 0, %s26
    %s20 = sphi 0, %s18
    %s21 = sphi 0, %s19
    %s22 = sphi 0, %s20
    %s23 = sphi 0, %s21
    %s35 = sphi 0, %s37
    %s38 = sphi 0, %s35
    %s39 = sphi 0, %s38
    %s55 = sphi 0, %s39
    %s61 = sphi 0, %s63
    %s64 = sphi 0, %s61
    %s65 = sphi 0, %s64
    %s81 = sphi 0, %s65
    %s85 = sphi 0, %s85
    %s87 = sphi 0, %s85
    %s88 = sphi 0, %s87
    %s102 = sphi 0, %s88
    %s106 = sphi 0, %s106
    %s108 = sphi 0, %s106
    %s109 = sphi 0, %s108
    %s123 = sphi 0, %s109
    %s127 = sphi 0, %s127
    %s129 = sphi 0, %s127
    %s130 = sphi 0, %s129
    %s144 = sphi 0, %s130
    %s152 = sphi 0, %s154
    %s155 = sphi 0, %s152
    %s156 = sphi 0, %s155
    %s172 = sphi 0, %s156
  $region4: #{_lambda_.1} parent=0 // loop_header_branch
    %14 = sbr.rel (%p12) target = $region8
  $region5: #{_lambda_.1} parent=0 // loop_body
    %s16 = ssub.s32 %s11, 1
    %s17 = ssub.s32 %s11, 2
    %s24 = sadd.s32 1, %s19
    %p25 = scmp.ge.s32.totalorder %s24, 1
    %s26 = scalar_select %p25, 0, %s24
    %s27 = sadd.s32 1, %s18
    %s28 = scalar_select %p25, %s27, %s18
    %p29 = scmp.ge.s32.totalorder %s28, 2
    %s30 = scalar_select %p29, 0, %s28
    %s31 = ssub.s32 %s18, %s30
    %s32 = ssub.s32 %s19, %s26
    %s33 = sor.u32 %s31, %s32
    %p34 = scmp.eq.s32.totalorder %s33, 0
    %s36 = sadd.s32 %s35, 1
    %s37 = scalar_select %p34, %s35, %s36
    %p40 = pneg %p34
    %p41 = scmp.eq.s32.totalorder %s11, 1
    %p42 = por %p40, %p41
    %p43 = scmp.ne.s32.totalorder %s35, %s38
    %p44 = scmp.eq.s32.totalorder %s11, 0
    %p45 = por %p43, %p44
    %p46 = scmp.ne.s32.totalorder %s35, %s38
    %p47 = scmp.eq.s32.totalorder %s16, 1
    %p48 = por %p46, %p47
    %p49 = scmp.ne.s32.totalorder %s38, %s39
    %p50 = scmp.eq.s32.totalorder %s16, 0
    %p51 = por %p49, %p50
    %p52 = scmp.ne.s32.totalorder %s38, %s39
    %p53 = scmp.eq.s32.totalorder %s17, 1
    %p54 = por %p52, %p53
    %p56 = scmp.ne.s32.totalorder %s39, %s55
    %p57 = scmp.eq.s32.totalorder %s17, 0
    %p58 = por %p56, %p57
    %s59 = ssub.s32 %s18, %s30
    %p60 = scmp.eq.s32.totalorder %s59, 0
    %s62 = sadd.s32 %s61, 1
    %s63 = scalar_select %p60, %s61, %s62
    %p66 = pneg %p60
    %p67 = scmp.eq.s32.totalorder %s11, 1
    %p68 = por %p66, %p67
    %p69 = scmp.ne.s32.totalorder %s61, %s64
    %p70 = scmp.eq.s32.totalorder %s11, 0
    %p71 = por %p69, %p70
    %p72 = scmp.ne.s32.totalorder %s61, %s64
    %p73 = scmp.eq.s32.totalorder %s16, 1
    %p74 = por %p72, %p73
    %p75 = scmp.ne.s32.totalorder %s64, %s65
    %p76 = scmp.eq.s32.totalorder %s16, 0
    %p77 = por %p75, %p76
    %p78 = scmp.ne.s32.totalorder %s64, %s65
    %p79 = scmp.eq.s32.totalorder %s17, 1
    %p80 = por %p78, %p79
    %p82 = scmp.ne.s32.totalorder %s65, %s81
    %p83 = scmp.eq.s32.totalorder %s17, 0
    %p84 = por %p82, %p83
    %s86 = sadd.s32 %s85, 1
    %p89 = scmp.eq.s32.totalorder %s11, 1
    %p90 = scmp.ne.s32.totalorder %s85, %s87
    %p91 = scmp.eq.s32.totalorder %s11, 0
    %p92 = por %p90, %p91
    %p93 = scmp.ne.s32.totalorder %s85, %s87
    %p94 = scmp.eq.s32.totalorder %s16, 1
    %p95 = por %p93, %p94
    %p96 = scmp.ne.s32.totalorder %s87, %s88
    %p97 = scmp.eq.s32.totalorder %s16, 0
    %p98 = por %p96, %p97
    %p99 = scmp.ne.s32.totalorder %s87, %s88
    %p100 = scmp.eq.s32.totalorder %s17, 1
    %p101 = por %p99, %p100
    %p103 = scmp.ne.s32.totalorder %s88, %s102
    %p104 = scmp.eq.s32.totalorder %s17, 0
    %p105 = por %p103, %p104
    %s107 = sadd.s32 %s106, 1
    %p110 = scmp.eq.s32.totalorder %s11, 1
    %p111 = scmp.ne.s32.totalorder %s106, %s108
    %p112 = scmp.eq.s32.totalorder %s11, 0
    %p113 = por %p111, %p112
    %p114 = scmp.ne.s32.totalorder %s106, %s108
    %p115 = scmp.eq.s32.totalorder %s16, 1
    %p116 = por %p114, %p115
    %p117 = scmp.ne.s32.totalorder %s108, %s109
    %p118 = scmp.eq.s32.totalorder %s16, 0
    %p119 = por %p117, %p118
    %p120 = scmp.ne.s32.totalorder %s108, %s109
    %p121 = scmp.eq.s32.totalorder %s17, 1
    %p122 = por %p120, %p121
    %p124 = scmp.ne.s32.totalorder %s109, %s123
    %p125 = scmp.eq.s32.totalorder %s17, 0
    %p126 = por %p124, %p125
    %s128 = sadd.s32 %s127, 1
    %p131 = scmp.eq.s32.totalorder %s11, 1
    %p132 = scmp.ne.s32.totalorder %s127, %s129
    %p133 = scmp.eq.s32.totalorder %s11, 0
    %p134 = por %p132, %p133
    %p135 = scmp.ne.s32.totalorder %s127, %s129
    %p136 = scmp.eq.s32.totalorder %s16, 1
    %p137 = por %p135, %p136
    %p138 = scmp.ne.s32.totalorder %s129, %s130
    %p139 = scmp.eq.s32.totalorder %s16, 0
    %p140 = por %p138, %p139
    %p141 = scmp.ne.s32.totalorder %s129, %s130
    %p142 = scmp.eq.s32.totalorder %s17, 1
    %p143 = por %p141, %p142
    %p145 = scmp.ne.s32.totalorder %s130, %s144
    %p146 = scmp.eq.s32.totalorder %s17, 0
    %p147 = por %p145, %p146
    %s148 = ssub.s32 %s18, %s30
    %s149 = ssub.s32 %s19, %s26
    %s150 = sor.u32 %s148, %s149
    %p151 = scmp.eq.s32.totalorder %s150, 0
    %s153 = sadd.s32 %s152, 1
    %s154 = scalar_select %p151, %s152, %s153
    %p157 = pneg %p151
    %p158 = scmp.eq.s32.totalorder %s11, 1
    %p159 = por %p157, %p158
    %p160 = scmp.ne.s32.totalorder %s152, %s155
    %p161 = scmp.eq.s32.totalorder %s11, 0
    %p162 = por %p160, %p161
    %p163 = scmp.ne.s32.totalorder %s152, %s155
    %p164 = scmp.eq.s32.totalorder %s16, 1
    %p165 = por %p163, %p164
    %p166 = scmp.ne.s32.totalorder %s155, %s156
    %p167 = scmp.eq.s32.totalorder %s16, 0
    %p168 = por %p166, %p167
    %p169 = scmp.ne.s32.totalorder %s155, %s156
    %p170 = scmp.eq.s32.totalorder %s17, 1
    %p171 = por %p169, %p170
    %p173 = scmp.ne.s32.totalorder %s156, %s172
    %p174 = scmp.eq.s32.totalorder %s17, 0
    %p175 = por %p173, %p174
    %p176 = scmp.le.s32.totalorder 1, %s11
    %p177 = scmp.lt.s32.totalorder %s11, 3
    %p178 = pnand %p176, %p177
    %p179 = pneg %p178
    // Predicated region
    $region9: #{_lambda_.1} parent=5 // pred_check
      _
    $region10: #{_lambda_.1} parent=5 // pred_check_branch
      %181 = sbr.rel (%p178) target = $region12
    $region11: #{_lambda_.1} parent=5 // pred_region
      %s182 = ssub.s32 %s11, 1
      // Predicated region
      $region13: #{_lambda_.1} parent=11 // pred_check
        %p183 = pneg %p98
      $region14: #{_lambda_.1} parent=11 // pred_check_branch
        %185 = sbr.rel (%p183) target = $region16
      $region15: #{_lambda_.1} parent=11 // pred_region
        _
      $region16: #{_lambda_.1} parent=11 // pred_fallthru
        _
      // Predicated region
      $region17: #{_lambda_.1} parent=11 // pred_check
        %p186 = pneg %p119
      $region18: #{_lambda_.1} parent=11 // pred_check_branch
        %188 = sbr.rel (%p186) target = $region20
      $region19: #{_lambda_.1} parent=11 // pred_region
        _
      $region20: #{_lambda_.1} parent=11 // pred_fallthru
        _
      // Predicated region
      $region21: #{_lambda_.1} parent=11 // pred_check
        %p189 = pneg %p140
      $region22: #{_lambda_.1} parent=11 // pred_check_branch
        %191 = sbr.rel (%p189) target = $region24
      $region23: #{_lambda_.1} parent=11 // pred_region
        _
      $region24: #{_lambda_.1} parent=11 // pred_fallthru
        _
    $region12: #{_lambda_.1} parent=5 // pred_fallthru
      _
    %p192 = scmp.lt.s32.totalorder %s11, 2
    // Predicated region
    $region25: #{_lambda_.1} parent=5 // pred_check
      %p193 = pneg %p192
    $region26: #{_lambda_.1} parent=5 // pred_check_branch
      %195 = sbr.rel (%p193) target = $region28
    $region27: #{_lambda_.1} parent=5 // pred_region
      // Predicated region
      $region29: #{_lambda_.1} parent=27 // pred_check
        %p196 = pneg %p45
      $region30: #{_lambda_.1} parent=27 // pred_check_branch
        %198 = sbr.rel (%p196) target = $region32
      $region31: #{_lambda_.1} parent=27 // pred_region
        %s199 = smul.u32 2, %s19
        %p200 = scmp.lt.s32.totalorder %s18, 1
        %s201 = scalar_select %p200, %s18, 1
        %p202 = scmp.lt.s32.totalorder %s199, 1
        %s203 = scalar_select %p202, %s199, 1
        %s204 = smul.addr %s201, 2
        %s205 = sadd.s32 %s203, %s204
        %s206 = smul.addr %s205, 4
        %s207 = scalar_lea.vmem %s0, %s206
        %s208 = smul.u32 2, %s19
      $region32: #{_lambda_.1} parent=27 // pred_fallthru
        _
      // Predicated region
      $region33: #{_lambda_.1} parent=27 // pred_check
        %p209 = pneg %p71
      $region34: #{_lambda_.1} parent=27 // pred_check_branch
        %211 = sbr.rel (%p209) target = $region36
      $region35: #{_lambda_.1} parent=27 // pred_region
        %p212 = scmp.lt.s32.totalorder %s18, 1
        %s213 = scalar_select %p212, %s18, 1
        %s214 = smul.addr %s213, 2
        %s215 = smul.addr %s214, 8
        %s216 = scalar_lea.vmem %s1, %s215
      $region36: #{_lambda_.1} parent=27 // pred_fallthru
        _
    $region28: #{_lambda_.1} parent=5 // pred_fallthru
      _
    %p217 = scmp.le.s32.totalorder 1, %s11
    %p218 = scmp.lt.s32.totalorder %s11, 3
    %p219 = pnand %p217, %p218
    %p220 = pneg %p219
    // Predicated region
    $region37: #{_lambda_.1} parent=5 // pred_check
      _
    $region38: #{_lambda_.1} parent=5 // pred_check_branch
      %222 = sbr.rel (%p219) target = $region40
    $region39: #{_lambda_.1} parent=5 // pred_region
      %s223 = ssub.s32 %s11, 1
      %s224 = smul.u32 2, %s21
      %p225 = scmp.lt.s32.totalorder %s20, 1
      %s226 = scalar_select %p225, %s20, 1
      %p227 = scmp.lt.s32.totalorder %s224, 1
      %s228 = scalar_select %p227, %s224, 1
      %s229 = smul.addr %s226, 2
      %s230 = sadd.s32 %s228, %s229
      %s231 = smul.addr %s230, 4
      %s232 = scalar_lea.vmem %s0, %s231
      %p233 = pneg %p51
      %p234 = pneg %p48
      %p235 = scmp.lt.s32.totalorder %s20, 1
      %s236 = scalar_select %p235, %s20, 1
      %s237 = smul.addr %s236, 2
      %s238 = smul.addr %s237, 8
      %s239 = scalar_lea.vmem %s1, %s238
      %p240 = pneg %p77
      %p241 = pneg %p74
      %p242 = pneg %p98
      %p243 = pneg %p95
      %p244 = pneg %p119
      %p245 = pneg %p116
      %p246 = pneg %p140
      %p247 = pneg %p137
      %p248 = pneg %p168
      %p249 = pneg %p165
      %s250 = smul.u32 16, %s21
      %p251 = scmp.lt.s32.totalorder %s20, 1
      %s252 = scalar_select %p251, %s20, 1
      %p253 = scmp.lt.s32.totalorder %s250, 15
      %s254 = scalar_select %p253, %s250, 15
      %s255 = smul.addr %s254, 2
      %s256 = smul.addr %s252, 32
      %s257 = sadd.s32 %s255, %s256
      %s258 = smul.addr %s257, 8
      %s259 = scalar_lea.vmem %s5, %s258
      %s260 = smul.u32 2, %s21
      %p261 = scmp.lt.s32.totalorder %s20, 1
      %s262 = scalar_select %p261, %s20, 1
      %p263 = scmp.lt.s32.totalorder %s260, 1
      %s264 = scalar_select %p263, %s260, 1
      %s265 = smul.addr %s262, 2
      %s266 = sadd.s32 %s264, %s265
      %s267 = smul.addr %s266, 4
      %s268 = scalar_lea.vmem %s0, %s267
      %s269 = smul.u32 2, %s21
      %p270 = scmp.lt.s32.totalorder %s20, 1
      %s271 = scalar_select %p270, %s20, 1
      %s272 = smul.addr %s271, 2
      %s273 = smul.addr %s272, 8
      %s274 = scalar_lea.vmem %s1, %s273
      %s275 = smul.u32 16, %s21
      %p276 = scmp.lt.s32.totalorder %s20, 1
      %s277 = scalar_select %p276, %s20, 1
      %p278 = scmp.lt.s32.totalorder %s275, 15
      %s279 = scalar_select %p278, %s275, 15
      %s280 = smul.addr %s279, 2
      %s281 = smul.addr %s277, 32
      %s282 = sadd.s32 %s280, %s281
      %s283 = smul.addr %s282, 8
      %s284 = scalar_lea.vmem %s5, %s283
      %s285 = smul.u32 16, %s21
      %v287 = vld [vmem:[%s274] sm:$0xff]
      %v288 = vld [vmem:[%s274 + $0x8] sm:$0xff]
      %v289 = vld [vmem:[%s2] sm:$0xf]
      %v290 = vld [vmem:[%s2 + $0x4] sm:$0xf]
      %v291 = vld [vmem:[%s2 + $0x8] sm:$0xf]
      %v292 = vld [vmem:[%s2 + $0xc] sm:$0xf]
      %v293 = vld [vmem:[%s3] sm:$0xf]
      %v294 = vld [vmem:[%s3 + $0x4] sm:$0xf]
      %v295 = vld [vmem:[%s3 + $0x8] sm:$0xf]
      %v296 = vld [vmem:[%s3 + $0xc] sm:$0xf]
      %v297 = vld [vmem:[%s4] sm:$0x1]
      %v298 = vld [vmem:[%s268] sm:$0xf]
      %v299 = vld [vmem:[%s268 + $0x4] sm:$0xf]
      %v302 = vunpack.c.l.b16 %v298
      %v303 = vunpack.c.l.b16 %v299
      %v304 = vpack.c.b16 %v303, %v302
      %v309 = vunpack.c.l.b16 %v289
      %v310 = vunpack.c.l.b16 %v290
      %v311 = vunpack.c.l.b16 %v291
      %v312 = vunpack.c.l.b16 %v292
      %v313 = vpack.c.b16 %v310, %v309
      %v314 = vpack.c.b16 %v312, %v311
      %vm317 = vcmask 261120
      %v319 = vsel %vm317, %v304, 0
      %321 = vmatprep.subr.bf16.mxu0 0
      %322 = vmatpush1.bf16.msra.mxu0 0
      %323 = vmatprep.subr.bf16.mxu0 0
      %324 = vmatpush1.bf16.msra.mxu0 0
      %325 = vmatprep.subr.bf16.mxu0 0
      %326 = vmatpush1.bf16.msra.mxu0 0
      %327 = vmatprep.subr.bf16.mxu0 0
      %328 = vmatpush1.bf16.msra.mxu0 0
      %329 = vmatprep.subr.bf16.mxu0 0
      %330 = vmatpush1.bf16.msra.mxu0 0
      %331 = vmatprep.subr.bf16.mxu0 0
      %332 = vmatpush1.bf16.msra.mxu0 0
      %333 = vmatprep.subr.bf16.mxu0 0
      %334 = vmatpush1.bf16.msra.mxu0 %v314
      %335 = vmatprep.subr.bf16.mxu0 0
      %336 = vmatpush1.bf16.msra.mxu0 %v313
      %337 = vmatprep.subr.bf16.mxu0 0
      %338 = vmatpush2.bf16.msra.mxu0 0
      %339 = vmatprep.subr.bf16.mxu0 0
      %340 = vmatpush2.bf16.msra.mxu0 0
      %341 = vmatprep.subr.bf16.mxu0 0
      %342 = vmatpush2.bf16.msra.mxu0 0
      %343 = vmatprep.subr.bf16.mxu0 0
      %344 = vmatpush2.bf16.msra.mxu0 0
      %345 = vmatprep.subr.bf16.mxu0 0
      %346 = vmatpush2.bf16.msra.mxu0 0
      %347 = vmatprep.subr.bf16.mxu0 0
      %348 = vmatpush2.bf16.msra.mxu0 0
      %349 = vmatprep.subr.bf16.mxu0 0
      %350 = vmatpush2.bf16.msra.mxu0 0
      %351 = vmatprep.subr.bf16.mxu0 0
      %352 = vmatpush2.bf16.msra.mxu0 0
      %353 = vmatprep.mubr.bf16.mxu0 0
      %354 = vmatmul.mubr.bf16.gmra.mxu0 %v319
      %v355 = vpop.f32.mrf.mxu0
      %v356 = vadd.f32 0.0, %v355
      %v357 = vpop.f32.mrf.mxu0
      %v358 = vpop.f32.mrf.mxu0
      %v359 = vadd.f32 0.0, %v358
      %v360 = vpop.f32.mrf.mxu0
      %361 = vdwg.mxu0
      %v364 = vcombine.high %v356, %v356
      %v366 = vunpack.c.l.s4 1966171168
      %v367 = vunpack.c.0.s8 %v366
      %v368 = vlaneseq
      %v369 = vshrl.u32 %v368, 7
      %v370 = vsub.s32 %v367, %v369
      %v371 = vrot.slane %v356, %v370
      %v373 = vunpack.c.l.s4 1966171168
      %v374 = vunpack.c.0.s8 %v373
      %v375 = vlaneseq
      %v376 = vshrl.u32 %v375, 7
      %v377 = vsub.s32 %v374, %v376
      %v378 = vrot.slane %v364, %v377
      %v379 = vcombine.high %v371, %v371
      %v380 = vcombine.high %v378, %v378
      %v382 = vunpack.c.l.s4 1966171168
      %v383 = vunpack.c.0.s8 %v382
      %v384 = vlaneseq
      %v385 = vshrl.u32 %v384, 7
      %v386 = vsub.s32 %v383, %v385
      %v387 = vrot.slane %v371, %v386
      %v389 = vunpack.c.l.s4 1966171168
      %v390 = vunpack.c.0.s8 %v389
      %v391 = vlaneseq
      %v392 = vshrl.u32 %v391, 7
      %v393 = vsub.s32 %v390, %v392
      %v394 = vrot.slane %v378, %v393
      %v396 = vunpack.c.l.s4 1966171168
      %v397 = vunpack.c.0.s8 %v396
      %v398 = vlaneseq
      %v399 = vshrl.u32 %v398, 7
      %v400 = vsub.s32 %v397, %v399
      %v401 = vrot.slane %v379, %v400
      %v403 = vunpack.c.l.s4 1966171168
      %v404 = vunpack.c.0.s8 %v403
      %v405 = vlaneseq
      %v406 = vshrl.u32 %v405, 7
      %v407 = vsub.s32 %v404, %v406
      %v408 = vrot.slane %v380, %v407
      %v409 = vcombine.high %v387, %v387
      %v410 = vcombine.high %v394, %v394
      %v411 = vcombine.high %v401, %v401
      %v412 = vcombine.high %v408, %v408
      %v413 = vcombine.high %v359, %v359
      %v415 = vunpack.c.l.s4 1966171168
      %v416 = vunpack.c.0.s8 %v415
      %v417 = vlaneseq
      %v418 = vshrl.u32 %v417, 7
      %v419 = vsub.s32 %v416, %v418
      %v420 = vrot.slane %v359, %v419
      %v422 = vunpack.c.l.s4 1966171168
      %v423 = vunpack.c.0.s8 %v422
      %v424 = vlaneseq
      %v425 = vshrl.u32 %v424, 7
      %v426 = vsub.s32 %v423, %v425
      %v427 = vrot.slane %v413, %v426
      %v428 = vcombine.high %v420, %v420
      %v429 = vcombine.high %v427, %v427
      %v431 = vunpack.c.l.s4 1966171168
      %v432 = vunpack.c.0.s8 %v431
      %v433 = vlaneseq
      %v434 = vshrl.u32 %v433, 7
      %v435 = vsub.s32 %v432, %v434
      %v436 = vrot.slane %v420, %v435
      %v438 = vunpack.c.l.s4 1966171168
      %v439 = vunpack.c.0.s8 %v438
      %v440 = vlaneseq
      %v441 = vshrl.u32 %v440, 7
      %v442 = vsub.s32 %v439, %v441
      %v443 = vrot.slane %v427, %v442
      %v445 = vunpack.c.l.s4 1966171168
      %v446 = vunpack.c.0.s8 %v445
      %v447 = vlaneseq
      %v448 = vshrl.u32 %v447, 7
      %v449 = vsub.s32 %v446, %v448
      %v450 = vrot.slane %v428, %v449
      %v452 = vunpack.c.l.s4 1966171168
      %v453 = vunpack.c.0.s8 %v452
      %v454 = vlaneseq
      %v455 = vshrl.u32 %v454, 7
      %v456 = vsub.s32 %v453, %v455
      %v457 = vrot.slane %v429, %v456
      %v458 = vcombine.high %v436, %v436
      %v459 = vcombine.high %v443, %v443
      %v460 = vcombine.high %v450, %v450
      %v461 = vcombine.high %v457, %v457
      %v462 = vlaneseq
      %v463 = vshrl.u32 %v462, 7
      %v464 = vsub.s32 0, %v463
      %v465 = vrot.slane %v387, %v464
      %v466 = vlaneseq
      %v467 = vshrl.u32 %v466, 7
      %v468 = vsub.s32 0, %v467
      %v469 = vrot.slane %v401, %v468
      %v470 = vlaneseq
      %v471 = vshrl.u32 %v470, 7
      %v472 = vsub.s32 0, %v471
      %v473 = vrot.slane %v409, %v472
      %v474 = vlaneseq
      %v475 = vshrl.u32 %v474, 7
      %v476 = vsub.s32 0, %v475
      %v477 = vrot.slane %v411, %v476
      %v478 = vlaneseq
      %v479 = vshrl.u32 %v478, 7
      %v480 = vsub.s32 0, %v479
      %v481 = vrot.slane %v394, %v480
      %v482 = vlaneseq
      %v483 = vshrl.u32 %v482, 7
      %v484 = vsub.s32 0, %v483
      %v485 = vrot.slane %v408, %v484
      %v486 = vlaneseq
      %v487 = vshrl.u32 %v486, 7
      %v488 = vsub.s32 0, %v487
      %v489 = vrot.slane %v410, %v488
      %v490 = vlaneseq
      %v491 = vshrl.u32 %v490, 7
      %v492 = vsub.s32 0, %v491
      %v493 = vrot.slane %v412, %v492
      %v494 = vlaneseq
      %v495 = vshrl.u32 %v494, 7
      %v496 = vsub.s32 0, %v495
      %v497 = vrot.slane %v436, %v496
      %v498 = vlaneseq
      %v499 = vshrl.u32 %v498, 7
      %v500 = vsub.s32 0, %v499
      %v501 = vrot.slane %v450, %v500
      %v502 = vlaneseq
      %v503 = vshrl.u32 %v502, 7
      %v504 = vsub.s32 0, %v503
      %v505 = vrot.slane %v458, %v504
      %v506 = vlaneseq
      %v507 = vshrl.u32 %v506, 7
      %v508 = vsub.s32 0, %v507
      %v509 = vrot.slane %v460, %v508
      %v510 = vlaneseq
      %v511 = vshrl.u32 %v510, 7
      %v512 = vsub.s32 0, %v511
      %v513 = vrot.slane %v443, %v512
      %v514 = vlaneseq
      %v515 = vshrl.u32 %v514, 7
      %v516 = vsub.s32 0, %v515
      %v517 = vrot.slane %v457, %v516
      %v518 = vlaneseq
      %v519 = vshrl.u32 %v518, 7
      %v520 = vsub.s32 0, %v519
      %v521 = vrot.slane %v459, %v520
      %v522 = vlaneseq
      %v523 = vshrl.u32 %v522, 7
      %v524 = vsub.s32 0, %v523
      %v525 = vrot.slane %v461, %v524
      %v542 = vadd.f32 %v465, %v287
      %v543 = vadd.f32 %v465, %v288
      %v544 = vadd.f32 %v469, %v287
      %v545 = vadd.f32 %v469, %v288
      %v546 = vadd.f32 %v473, %v287
      %v547 = vadd.f32 %v473, %v288
      %v548 = vadd.f32 %v477, %v287
      %v549 = vadd.f32 %v477, %v288
      %v550 = vadd.f32 %v481, %v287
      %v551 = vadd.f32 %v481, %v288
      %v552 = vadd.f32 %v485, %v287
      %v553 = vadd.f32 %v485, %v288
      %v554 = vadd.f32 %v489, %v287
      %v555 = vadd.f32 %v489, %v288
      %v556 = vadd.f32 %v493, %v287
      %v557 = vadd.f32 %v493, %v288
      %v558 = vadd.f32 %v497, %v287
      %v559 = vadd.f32 %v497, %v288
      %v560 = vadd.f32 %v501, %v287
      %v561 = vadd.f32 %v501, %v288
      %v562 = vadd.f32 %v505, %v287
      %v563 = vadd.f32 %v505, %v288
      %v564 = vadd.f32 %v509, %v287
      %v565 = vadd.f32 %v509, %v288
      %v566 = vadd.f32 %v513, %v287
      %v567 = vadd.f32 %v513, %v288
      %v568 = vadd.f32 %v517, %v287
      %v569 = vadd.f32 %v517, %v288
      %v570 = vadd.f32 %v521, %v287
      %v571 = vadd.f32 %v521, %v288
      %v572 = vadd.f32 %v525, %v287
      %v573 = vadd.f32 %v525, %v288
      %v574 = vtanh.pop %v542
      %v575 = vtanh.pop %v543
      %v576 = vtanh.pop %v544
      %v577 = vtanh.pop %v545
      %v578 = vtanh.pop %v546
      %v579 = vtanh.pop %v547
      %v580 = vtanh.pop %v548
      %v581 = vtanh.pop %v549
      %v582 = vtanh.pop %v550
      %v583 = vtanh.pop %v551
      %v584 = vtanh.pop %v552
      %v585 = vtanh.pop %v553
      %v586 = vtanh.pop %v554
      %v587 = vtanh.pop %v555
      %v588 = vtanh.pop %v556
      %v589 = vtanh.pop %v557
      %v590 = vtanh.pop %v558
      %v591 = vtanh.pop %v559
      %v592 = vtanh.pop %v560
      %v593 = vtanh.pop %v561
      %v594 = vtanh.pop %v562
      %v595 = vtanh.pop %v563
      %v596 = vtanh.pop %v564
      %v597 = vtanh.pop %v565
      %v598 = vtanh.pop %v566
      %v599 = vtanh.pop %v567
      %v600 = vtanh.pop %v568
      %v601 = vtanh.pop %v569
      %v602 = vtanh.pop %v570
      %v603 = vtanh.pop %v571
      %v604 = vtanh.pop %v572
      %v605 = vtanh.pop %v573
      %v606 = vpack.c.bf16 %v575, %v574
      %v607 = vpack.c.bf16 %v577, %v576
      %v608 = vpack.c.bf16 %v579, %v578
      %v609 = vpack.c.bf16 %v581, %v580
      %v610 = vpack.c.bf16 %v583, %v582
      %v611 = vpack.c.bf16 %v585, %v584
      %v612 = vpack.c.bf16 %v587, %v586
      %v613 = vpack.c.bf16 %v589, %v588
      %v614 = vpack.c.bf16 %v591, %v590
      %v615 = vpack.c.bf16 %v593, %v592
      %v616 = vpack.c.bf16 %v595, %v594
      %v617 = vpack.c.bf16 %v597, %v596
      %v618 = vpack.c.bf16 %v599, %v598
      %v619 = vpack.c.bf16 %v601, %v600
      %v620 = vpack.c.bf16 %v603, %v602
      %v621 = vpack.c.bf16 %v605, %v604
      %v623 = vlaneseq
      %v624 = vshrl.u32 %v623, 7
      %v625 = vsub.s32 0, %v624
      %v626 = vrot.slane %v297, %v625
      %v632 = vunpack.c.l.b16 %v293
      %v633 = vunpack.c.l.b16 %v294
      %v634 = vunpack.c.l.b16 %v295
      %v635 = vunpack.c.l.b16 %v296
      %v636 = vpack.c.b16 %v633, %v632
      %v637 = vpack.c.b16 %v635, %v634
      %v641 = vsel %vm317, %v606, 0
      %v644 = vsel %vm317, %v607, 0
      %v647 = vsel %vm317, %v608, 0
      %v650 = vsel %vm317, %v609, 0
      %v653 = vsel %vm317, %v610, 0
      %v656 = vsel %vm317, %v611, 0
      %v659 = vsel %vm317, %v612, 0
      %v662 = vsel %vm317, %v613, 0
      %v665 = vsel %vm317, %v614, 0
      %v668 = vsel %vm317, %v615, 0
      %v671 = vsel %vm317, %v616, 0
      %v674 = vsel %vm317, %v617, 0
      %v677 = vsel %vm317, %v618, 0
      %v680 = vsel %vm317, %v619, 0
      %v683 = vsel %vm317, %v620, 0
      %v686 = vsel %vm317, %v621, 0
      %688 = vmatprep.subr.bf16.mxu0 0
      %689 = vmatpush1.bf16.msra.mxu0 0
      %690 = vmatprep.subr.bf16.mxu0 0
      %691 = vmatpush1.bf16.msra.mxu0 0
      %692 = vmatprep.subr.bf16.mxu0 0
      %693 = vmatpush1.bf16.msra.mxu0 0
      %694 = vmatprep.subr.bf16.mxu0 0
      %695 = vmatpush1.bf16.msra.mxu0 0
      %696 = vmatprep.subr.bf16.mxu0 0
      %697 = vmatpush1.bf16.msra.mxu0 0
      %698 = vmatprep.subr.bf16.mxu0 0
      %699 = vmatpush1.bf16.msra.mxu0 0
      %700 = vmatprep.subr.bf16.mxu0 0
      %701 = vmatpush1.bf16.msra.mxu0 %v637
      %702 = vmatprep.subr.bf16.mxu0 0
      %703 = vmatpush1.bf16.msra.mxu0 %v636
      %704 = vmatprep.subr.bf16.mxu0 0
      %705 = vmatpush2.bf16.msra.mxu0 0
      %706 = vmatprep.subr.bf16.mxu0 0
      %707 = vmatpush2.bf16.msra.mxu0 0
      %708 = vmatprep.subr.bf16.mxu0 0
      %709 = vmatpush2.bf16.msra.mxu0 0
      %710 = vmatprep.subr.bf16.mxu0 0
      %711 = vmatpush2.bf16.msra.mxu0 0
      %712 = vmatprep.subr.bf16.mxu0 0
      %713 = vmatpush2.bf16.msra.mxu0 0
      %714 = vmatprep.subr.bf16.mxu0 0
      %715 = vmatpush2.bf16.msra.mxu0 0
      %716 = vmatprep.subr.bf16.mxu0 0
      %717 = vmatpush2.bf16.msra.mxu0 0
      %718 = vmatprep.subr.bf16.mxu0 0
      %719 = vmatpush2.bf16.msra.mxu0 0
      %720 = vmatprep.mubr.bf16.mxu0 0
      %721 = vmatmul.mubr.bf16.gmra.mxu0 %v641
      %v722 = vpop.f32.mrf.mxu0
      %v723 = vadd.f32 %v626, %v722
      %v724 = vpop.f32.mrf.mxu0
      %v725 = vpop.f32.mrf.mxu0
      %v726 = vadd.f32 %v626, %v725
      %v727 = vpop.f32.mrf.mxu0
      %728 = vmatprep.mubr.bf16.mxu0 0
      %729 = vmatmul.mubr.bf16.gmra.mxu0 %v644
      %v730 = vpop.f32.mrf.mxu0
      %v731 = vadd.f32 %v626, %v730
      %v732 = vpop.f32.mrf.mxu0
      %v733 = vpop.f32.mrf.mxu0
      %v734 = vadd.f32 %v626, %v733
      %v735 = vpop.f32.mrf.mxu0
      %736 = vmatprep.mubr.bf16.mxu0 0
      %737 = vmatmul.mubr.bf16.gmra.mxu0 %v647
      %v738 = vpop.f32.mrf.mxu0
      %v739 = vadd.f32 %v626, %v738
      %v740 = vpop.f32.mrf.mxu0
      %v741 = vpop.f32.mrf.mxu0
      %v742 = vadd.f32 %v626, %v741
      %v743 = vpop.f32.mrf.mxu0
      %744 = vmatprep.mubr.bf16.mxu0 0
      %745 = vmatmul.mubr.bf16.gmra.mxu0 %v650
      %v746 = vpop.f32.mrf.mxu0
      %v747 = vadd.f32 %v626, %v746
      %v748 = vpop.f32.mrf.mxu0
      %v749 = vpop.f32.mrf.mxu0
      %v750 = vadd.f32 %v626, %v749
      %v751 = vpop.f32.mrf.mxu0
      %752 = vmatprep.mubr.bf16.mxu0 0
      %753 = vmatmul.mubr.bf16.gmra.mxu0 %v653
      %v754 = vpop.f32.mrf.mxu0
      %v755 = vadd.f32 %v626, %v754
      %v756 = vpop.f32.mrf.mxu0
      %v757 = vpop.f32.mrf.mxu0
      %v758 = vadd.f32 %v626, %v757
      %v759 = vpop.f32.mrf.mxu0
      %760 = vmatprep.mubr.bf16.mxu0 0
      %761 = vmatmul.mubr.bf16.gmra.mxu0 %v656
      %v762 = vpop.f32.mrf.mxu0
      %v763 = vadd.f32 %v626, %v762
      %v764 = vpop.f32.mrf.mxu0
      %v765 = vpop.f32.mrf.mxu0
      %v766 = vadd.f32 %v626, %v765
      %v767 = vpop.f32.mrf.mxu0
      %768 = vmatprep.mubr.bf16.mxu0 0
      %769 = vmatmul.mubr.bf16.gmra.mxu0 %v659
      %v770 = vpop.f32.mrf.mxu0
      %v771 = vadd.f32 %v626, %v770
      %v772 = vpop.f32.mrf.mxu0
      %v773 = vpop.f32.mrf.mxu0
      %v774 = vadd.f32 %v626, %v773
      %v775 = vpop.f32.mrf.mxu0
      %776 = vmatprep.mubr.bf16.mxu0 0
      %777 = vmatmul.mubr.bf16.gmra.mxu0 %v662
      %v778 = vpop.f32.mrf.mxu0
      %v779 = vadd.f32 %v626, %v778
      %v780 = vpop.f32.mrf.mxu0
      %v781 = vpop.f32.mrf.mxu0
      %v782 = vadd.f32 %v626, %v781
      %v783 = vpop.f32.mrf.mxu0
      %784 = vmatprep.mubr.bf16.mxu0 0
      %785 = vmatmul.mubr.bf16.gmra.mxu0 %v665
      %v786 = vpop.f32.mrf.mxu0
      %v787 = vadd.f32 %v626, %v786
      %v788 = vpop.f32.mrf.mxu0
      %v789 = vpop.f32.mrf.mxu0
      %v790 = vadd.f32 %v626, %v789
      %v791 = vpop.f32.mrf.mxu0
      %792 = vmatprep.mubr.bf16.mxu0 0
      %793 = vmatmul.mubr.bf16.gmra.mxu0 %v668
      %v794 = vpop.f32.mrf.mxu0
      %v795 = vadd.f32 %v626, %v794
      %v796 = vpop.f32.mrf.mxu0
      %v797 = vpop.f32.mrf.mxu0
      %v798 = vadd.f32 %v626, %v797
      %v799 = vpop.f32.mrf.mxu0
      %800 = vmatprep.mubr.bf16.mxu0 0
      %801 = vmatmul.mubr.bf16.gmra.mxu0 %v671
      %v802 = vpop.f32.mrf.mxu0
      %v803 = vadd.f32 %v626, %v802
      %v804 = vpop.f32.mrf.mxu0
      %v805 = vpop.f32.mrf.mxu0
      %v806 = vadd.f32 %v626, %v805
      %v807 = vpop.f32.mrf.mxu0
      %808 = vmatprep.mubr.bf16.mxu0 0
      %809 = vmatmul.mubr.bf16.gmra.mxu0 %v674
      %v810 = vpop.f32.mrf.mxu0
      %v811 = vadd.f32 %v626, %v810
      %v812 = vpop.f32.mrf.mxu0
      %v813 = vpop.f32.mrf.mxu0
      %v814 = vadd.f32 %v626, %v813
      %v815 = vpop.f32.mrf.mxu0
      %816 = vmatprep.mubr.bf16.mxu0 0
      %817 = vmatmul.mubr.bf16.gmra.mxu0 %v677
      %v818 = vpop.f32.mrf.mxu0
      %v819 = vadd.f32 %v626, %v818
      %v820 = vpop.f32.mrf.mxu0
      %v821 = vpop.f32.mrf.mxu0
      %v822 = vadd.f32 %v626, %v821
      %v823 = vpop.f32.mrf.mxu0
      %824 = vmatprep.mubr.bf16.mxu0 0
      %825 = vmatmul.mubr.bf16.gmra.mxu0 %v680
      %v826 = vpop.f32.mrf.mxu0
      %v827 = vadd.f32 %v626, %v826
      %v828 = vpop.f32.mrf.mxu0
      %v829 = vpop.f32.mrf.mxu0
      %v830 = vadd.f32 %v626, %v829
      %v831 = vpop.f32.mrf.mxu0
      %832 = vmatprep.mubr.bf16.mxu0 0
      %833 = vmatmul.mubr.bf16.gmra.mxu0 %v683
      %v834 = vpop.f32.mrf.mxu0
      %v835 = vadd.f32 %v626, %v834
      %v836 = vpop.f32.mrf.mxu0
      %v837 = vpop.f32.mrf.mxu0
      %v838 = vadd.f32 %v626, %v837
      %v839 = vpop.f32.mrf.mxu0
      %840 = vmatprep.mubr.bf16.mxu0 0
      %841 = vmatmul.mubr.bf16.gmra.mxu0 %v686
      %v842 = vpop.f32.mrf.mxu0
      %v843 = vadd.f32 %v626, %v842
      %v844 = vpop.f32.mrf.mxu0
      %v845 = vpop.f32.mrf.mxu0
      %v846 = vadd.f32 %v626, %v845
      %v847 = vpop.f32.mrf.mxu0
      %848 = vdwg.mxu0
      %849 = vmax.xlane.f32.xlu0 %v723
      %v850 = vpop.xlane.xlu0 %849
      %851 = vmax.xlane.f32.xlu0 %v726
      %v852 = vpop.xlane.xlu0 %851
      %853 = vmax.xlane.f32.xlu0 %v731
      %v854 = vpop.xlane.xlu0 %853
      %855 = vmax.xlane.f32.xlu0 %v734
      %v856 = vpop.xlane.xlu0 %855
      %857 = vmax.xlane.f32.xlu0 %v739
      %v858 = vpop.xlane.xlu0 %857
      %859 = vmax.xlane.f32.xlu0 %v742
      %v860 = vpop.xlane.xlu0 %859
      %861 = vmax.xlane.f32.xlu0 %v747
      %v862 = vpop.xlane.xlu0 %861
      %863 = vmax.xlane.f32.xlu0 %v750
      %v864 = vpop.xlane.xlu0 %863
      %865 = vmax.xlane.f32.xlu0 %v755
      %v866 = vpop.xlane.xlu0 %865
      %867 = vmax.xlane.f32.xlu0 %v758
      %v868 = vpop.xlane.xlu0 %867
      %869 = vmax.xlane.f32.xlu0 %v763
      %v870 = vpop.xlane.xlu0 %869
      %871 = vmax.xlane.f32.xlu0 %v766
      %v872 = vpop.xlane.xlu0 %871
      %873 = vmax.xlane.f32.xlu0 %v771
      %v874 = vpop.xlane.xlu0 %873
      %875 = vmax.xlane.f32.xlu0 %v774
      %v876 = vpop.xlane.xlu0 %875
      %877 = vmax.xlane.f32.xlu0 %v779
      %v878 = vpop.xlane.xlu0 %877
      %879 = vmax.xlane.f32.xlu0 %v782
      %v880 = vpop.xlane.xlu0 %879
      %881 = vmax.xlane.f32.xlu0 %v787
      %v882 = vpop.xlane.xlu0 %881
      %883 = vmax.xlane.f32.xlu0 %v790
      %v884 = vpop.xlane.xlu0 %883
      %885 = vmax.xlane.f32.xlu0 %v795
      %v886 = vpop.xlane.xlu0 %885
      %887 = vmax.xlane.f32.xlu0 %v798
      %v888 = vpop.xlane.xlu0 %887
      %889 = vmax.xlane.f32.xlu0 %v803
      %v890 = vpop.xlane.xlu0 %889
      %891 = vmax.xlane.f32.xlu0 %v806
      %v892 = vpop.xlane.xlu0 %891
      %893 = vmax.xlane.f32.xlu0 %v811
      %v894 = vpop.xlane.xlu0 %893
      %895 = vmax.xlane.f32.xlu0 %v814
      %v896 = vpop.xlane.xlu0 %895
      %897 = vmax.xlane.f32.xlu0 %v819
      %v898 = vpop.xlane.xlu0 %897
      %899 = vmax.xlane.f32.xlu0 %v822
      %v900 = vpop.xlane.xlu0 %899
      %901 = vmax.xlane.f32.xlu0 %v827
      %v902 = vpop.xlane.xlu0 %901
      %903 = vmax.xlane.f32.xlu0 %v830
      %v904 = vpop.xlane.xlu0 %903
      %905 = vmax.xlane.f32.xlu0 %v835
      %v906 = vpop.xlane.xlu0 %905
      %907 = vmax.xlane.f32.xlu0 %v838
      %v908 = vpop.xlane.xlu0 %907
      %909 = vmax.xlane.f32.xlu0 %v843
      %v910 = vpop.xlane.xlu0 %909
      %911 = vmax.xlane.f32.xlu0 %v846
      %v912 = vpop.xlane.xlu0 %911
      %v913 = vsub.f32 %v723, %v850
      %v914 = vsub.f32 %v726, %v852
      %v915 = vsub.f32 %v731, %v854
      %v916 = vsub.f32 %v734, %v856
      %v917 = vsub.f32 %v739, %v858
      %v918 = vsub.f32 %v742, %v860
      %v919 = vsub.f32 %v747, %v862
      %v920 = vsub.f32 %v750, %v864
      %v921 = vsub.f32 %v755, %v866
      %v922 = vsub.f32 %v758, %v868
      %v923 = vsub.f32 %v763, %v870
      %v924 = vsub.f32 %v766, %v872
      %v925 = vsub.f32 %v771, %v874
      %v926 = vsub.f32 %v774, %v876
      %v927 = vsub.f32 %v779, %v878
      %v928 = vsub.f32 %v782, %v880
      %v929 = vsub.f32 %v787, %v882
      %v930 = vsub.f32 %v790, %v884
      %v931 = vsub.f32 %v795, %v886
      %v932 = vsub.f32 %v798, %v888
      %v933 = vsub.f32 %v803, %v890
      %v934 = vsub.f32 %v806, %v892
      %v935 = vsub.f32 %v811, %v894
      %v936 = vsub.f32 %v814, %v896
      %v937 = vsub.f32 %v819, %v898
      %v938 = vsub.f32 %v822, %v900
      %v939 = vsub.f32 %v827, %v902
      %v940 = vsub.f32 %v830, %v904
      %v941 = vsub.f32 %v835, %v906
      %v942 = vsub.f32 %v838, %v908
      %v943 = vsub.f32 %v843, %v910
      %v944 = vsub.f32 %v846, %v912
      %v945 = vmul.f32 %v913, 1.442695
      %v946 = vpow.pop %v945
      %v947 = vmul.f32 %v914, 1.442695
      %v948 = vpow.pop %v947
      %v949 = vmul.f32 %v915, 1.442695
      %v950 = vpow.pop %v949
      %v951 = vmul.f32 %v916, 1.442695
      %v952 = vpow.pop %v951
      %v953 = vmul.f32 %v917, 1.442695
      %v954 = vpow.pop %v953
      %v955 = vmul.f32 %v918, 1.442695
      %v956 = vpow.pop %v955
      %v957 = vmul.f32 %v919, 1.442695
      %v958 = vpow.pop %v957
      %v959 = vmul.f32 %v920, 1.442695
      %v960 = vpow.pop %v959
      %v961 = vmul.f32 %v921, 1.442695
      %v962 = vpow.pop %v961
      %v963 = vmul.f32 %v922, 1.442695
      %v964 = vpow.pop %v963
      %v965 = vmul.f32 %v923, 1.442695
      %v966 = vpow.pop %v965
      %v967 = vmul.f32 %v924, 1.442695
      %v968 = vpow.pop %v967
      %v969 = vmul.f32 %v925, 1.442695
      %v970 = vpow.pop %v969
      %v971 = vmul.f32 %v926, 1.442695
      %v972 = vpow.pop %v971
      %v973 = vmul.f32 %v927, 1.442695
      %v974 = vpow.pop %v973
      %v975 = vmul.f32 %v928, 1.442695
      %v976 = vpow.pop %v975
      %v977 = vmul.f32 %v929, 1.442695
      %v978 = vpow.pop %v977
      %v979 = vmul.f32 %v930, 1.442695
      %v980 = vpow.pop %v979
      %v981 = vmul.f32 %v931, 1.442695
      %v982 = vpow.pop %v981
      %v983 = vmul.f32 %v932, 1.442695
      %v984 = vpow.pop %v983
      %v985 = vmul.f32 %v933, 1.442695
      %v986 = vpow.pop %v985
      %v987 = vmul.f32 %v934, 1.442695
      %v988 = vpow.pop %v987
      %v989 = vmul.f32 %v935, 1.442695
      %v990 = vpow.pop %v989
      %v991 = vmul.f32 %v936, 1.442695
      %v992 = vpow.pop %v991
      %v993 = vmul.f32 %v937, 1.442695
      %v994 = vpow.pop %v993
      %v995 = vmul.f32 %v938, 1.442695
      %v996 = vpow.pop %v995
      %v997 = vmul.f32 %v939, 1.442695
      %v998 = vpow.pop %v997
      %v999 = vmul.f32 %v940, 1.442695
      %v1000 = vpow.pop %v999
      %v1001 = vmul.f32 %v941, 1.442695
      %v1002 = vpow.pop %v1001
      %v1003 = vmul.f32 %v942, 1.442695
      %v1004 = vpow.pop %v1003
      %v1005 = vmul.f32 %v943, 1.442695
      %v1006 = vpow.pop %v1005
      %v1007 = vmul.f32 %v944, 1.442695
      %v1008 = vpow.pop %v1007
      %1009 = vadd.xlane.f32.xlu0 %v946
      %v1010 = vpop.xlane.xlu0 %1009
      %1011 = vadd.xlane.f32.xlu0 %v948
      %v1012 = vpop.xlane.xlu0 %1011
      %1013 = vadd.xlane.f32.xlu0 %v950
      %v1014 = vpop.xlane.xlu0 %1013
      %1015 = vadd.xlane.f32.xlu0 %v952
      %v1016 = vpop.xlane.xlu0 %1015
      %1017 = vadd.xlane.f32.xlu0 %v954
      %v1018 = vpop.xlane.xlu0 %1017
      %1019 = vadd.xlane.f32.xlu0 %v956
      %v1020 = vpop.xlane.xlu0 %1019
      %1021 = vadd.xlane.f32.xlu0 %v958
      %v1022 = vpop.xlane.xlu0 %1021
      %1023 = vadd.xlane.f32.xlu0 %v960
      %v1024 = vpop.xlane.xlu0 %1023
      %1025 = vadd.xlane.f32.xlu0 %v962
      %v1026 = vpop.xlane.xlu0 %1025
      %1027 = vadd.xlane.f32.xlu0 %v964
      %v1028 = vpop.xlane.xlu0 %1027
      %1029 = vadd.xlane.f32.xlu0 %v966
      %v1030 = vpop.xlane.xlu0 %1029
      %1031 = vadd.xlane.f32.xlu0 %v968
      %v1032 = vpop.xlane.xlu0 %1031
      %1033 = vadd.xlane.f32.xlu0 %v970
      %v1034 = vpop.xlane.xlu0 %1033
      %1035 = vadd.xlane.f32.xlu0 %v972
      %v1036 = vpop.xlane.xlu0 %1035
      %1037 = vadd.xlane.f32.xlu0 %v974
      %v1038 = vpop.xlane.xlu0 %1037
      %1039 = vadd.xlane.f32.xlu0 %v976
      %v1040 = vpop.xlane.xlu0 %1039
      %1041 = vadd.xlane.f32.xlu0 %v978
      %v1042 = vpop.xlane.xlu0 %1041
      %1043 = vadd.xlane.f32.xlu0 %v980
      %v1044 = vpop.xlane.xlu0 %1043
      %1045 = vadd.xlane.f32.xlu0 %v982
      %v1046 = vpop.xlane.xlu0 %1045
      %1047 = vadd.xlane.f32.xlu0 %v984
      %v1048 = vpop.xlane.xlu0 %1047
      %1049 = vadd.xlane.f32.xlu0 %v986
      %v1050 = vpop.xlane.xlu0 %1049
      %1051 = vadd.xlane.f32.xlu0 %v988
      %v1052 = vpop.xlane.xlu0 %1051
      %1053 = vadd.xlane.f32.xlu0 %v990
      %v1054 = vpop.xlane.xlu0 %1053
      %1055 = vadd.xlane.f32.xlu0 %v992
      %v1056 = vpop.xlane.xlu0 %1055
      %1057 = vadd.xlane.f32.xlu0 %v994
      %v1058 = vpop.xlane.xlu0 %1057
      %1059 = vadd.xlane.f32.xlu0 %v996
      %v1060 = vpop.xlane.xlu0 %1059
      %1061 = vadd.xlane.f32.xlu0 %v998
      %v1062 = vpop.xlane.xlu0 %1061
      %1063 = vadd.xlane.f32.xlu0 %v1000
      %v1064 = vpop.xlane.xlu0 %1063
      %1065 = vadd.xlane.f32.xlu0 %v1002
      %v1066 = vpop.xlane.xlu0 %1065
      %1067 = vadd.xlane.f32.xlu0 %v1004
      %v1068 = vpop.xlane.xlu0 %1067
      %1069 = vadd.xlane.f32.xlu0 %v1006
      %v1070 = vpop.xlane.xlu0 %1069
      %1071 = vadd.xlane.f32.xlu0 %v1008
      %v1072 = vpop.xlane.xlu0 %1071
      %v1073 = vlog2.pop %v1010
      %v1074 = vmul.f32 %v1073, 0.6931472
      %v1075 = vlog2.pop %v1012
      %v1076 = vmul.f32 %v1075, 0.6931472
      %v1077 = vlog2.pop %v1014
      %v1078 = vmul.f32 %v1077, 0.6931472
      %v1079 = vlog2.pop %v1016
      %v1080 = vmul.f32 %v1079, 0.6931472
      %v1081 = vlog2.pop %v1018
      %v1082 = vmul.f32 %v1081, 0.6931472
      %v1083 = vlog2.pop %v1020
      %v1084 = vmul.f32 %v1083, 0.6931472
      %v1085 = vlog2.pop %v1022
      %v1086 = vmul.f32 %v1085, 0.6931472
      %v1087 = vlog2.pop %v1024
      %v1088 = vmul.f32 %v1087, 0.6931472
      %v1089 = vlog2.pop %v1026
      %v1090 = vmul.f32 %v1089, 0.6931472
      %v1091 = vlog2.pop %v1028
      %v1092 = vmul.f32 %v1091, 0.6931472
      %v1093 = vlog2.pop %v1030
      %v1094 = vmul.f32 %v1093, 0.6931472
      %v1095 = vlog2.pop %v1032
      %v1096 = vmul.f32 %v1095, 0.6931472
      %v1097 = vlog2.pop %v1034
      %v1098 = vmul.f32 %v1097, 0.6931472
      %v1099 = vlog2.pop %v1036
      %v1100 = vmul.f32 %v1099, 0.6931472
      %v1101 = vlog2.pop %v1038
      %v1102 = vmul.f32 %v1101, 0.6931472
      %v1103 = vlog2.pop %v1040
      %v1104 = vmul.f32 %v1103, 0.6931472
      %v1105 = vlog2.pop %v1042
      %v1106 = vmul.f32 %v1105, 0.6931472
      %v1107 = vlog2.pop %v1044
      %v1108 = vmul.f32 %v1107, 0.6931472
      %v1109 = vlog2.pop %v1046
      %v1110 = vmul.f32 %v1109, 0.6931472
      %v1111 = vlog2.pop %v1048
      %v1112 = vmul.f32 %v1111, 0.6931472
      %v1113 = vlog2.pop %v1050
      %v1114 = vmul.f32 %v1113, 0.6931472
      %v1115 = vlog2.pop %v1052
      %v1116 = vmul.f32 %v1115, 0.6931472
      %v1117 = vlog2.pop %v1054
      %v1118 = vmul.f32 %v1117, 0.6931472
      %v1119 = vlog2.pop %v1056
      %v1120 = vmul.f32 %v1119, 0.6931472
      %v1121 = vlog2.pop %v1058
      %v1122 = vmul.f32 %v1121, 0.6931472
      %v1123 = vlog2.pop %v1060
      %v1124 = vmul.f32 %v1123, 0.6931472
      %v1125 = vlog2.pop %v1062
      %v1126 = vmul.f32 %v1125, 0.6931472
      %v1127 = vlog2.pop %v1064
      %v1128 = vmul.f32 %v1127, 0.6931472
      %v1129 = vlog2.pop %v1066
      %v1130 = vmul.f32 %v1129, 0.6931472
      %v1131 = vlog2.pop %v1068
      %v1132 = vmul.f32 %v1131, 0.6931472
      %v1133 = vlog2.pop %v1070
      %v1134 = vmul.f32 %v1133, 0.6931472
      %v1135 = vlog2.pop %v1072
      %v1136 = vmul.f32 %v1135, 0.6931472
      %v1137 = vsub.f32 %v913, %v1074
      %v1138 = vsub.f32 %v914, %v1076
      %v1139 = vsub.f32 %v915, %v1078
      %v1140 = vsub.f32 %v916, %v1080
      %v1141 = vsub.f32 %v917, %v1082
      %v1142 = vsub.f32 %v918, %v1084
      %v1143 = vsub.f32 %v919, %v1086
      %v1144 = vsub.f32 %v920, %v1088
      %v1145 = vsub.f32 %v921, %v1090
      %v1146 = vsub.f32 %v922, %v1092
      %v1147 = vsub.f32 %v923, %v1094
      %v1148 = vsub.f32 %v924, %v1096
      %v1149 = vsub.f32 %v925, %v1098
      %v1150 = vsub.f32 %v926, %v1100
      %v1151 = vsub.f32 %v927, %v1102
      %v1152 = vsub.f32 %v928, %v1104
      %v1153 = vsub.f32 %v929, %v1106
      %v1154 = vsub.f32 %v930, %v1108
      %v1155 = vsub.f32 %v931, %v1110
      %v1156 = vsub.f32 %v932, %v1112
      %v1157 = vsub.f32 %v933, %v1114
      %v1158 = vsub.f32 %v934, %v1116
      %v1159 = vsub.f32 %v935, %v1118
      %v1160 = vsub.f32 %v936, %v1120
      %v1161 = vsub.f32 %v937, %v1122
      %v1162 = vsub.f32 %v938, %v1124
      %v1163 = vsub.f32 %v939, %v1126
      %v1164 = vsub.f32 %v940, %v1128
      %v1165 = vsub.f32 %v941, %v1130
      %v1166 = vsub.f32 %v942, %v1132
      %v1167 = vsub.f32 %v943, %v1134
      %v1168 = vsub.f32 %v944, %v1136
      %s1169 = smul.u32 0, 16
      %s1170 = scalar_lea.vmem %s284, %s1169
      %1171 = vst [vmem:[%s1170] sm:$0xff] %v1137
      %1172 = vst [vmem:[%s1170 + $0x8] sm:$0xff] %v1138
      %1173 = vst [vmem:[%s1170 + $0x10] sm:$0xff] %v1139
      %1174 = vst [vmem:[%s1170 + $0x18] sm:$0xff] %v1140
      %1175 = vst [vmem:[%s1170 + $0x20] sm:$0xff] %v1141
      %1176 = vst [vmem:[%s1170 + $0x28] sm:$0xff] %v1142
      %1177 = vst [vmem:[%s1170 + $0x30] sm:$0xff] %v1143
      %1178 = vst [vmem:[%s1170 + $0x38] sm:$0xff] %v1144
      %1179 = vst [vmem:[%s1170 + $0x40] sm:$0xff] %v1145
      %1180 = vst [vmem:[%s1170 + $0x48] sm:$0xff] %v1146
      %1181 = vst [vmem:[%s1170 + $0x50] sm:$0xff] %v1147
      %1182 = vst [vmem:[%s1170 + $0x58] sm:$0xff] %v1148
      %1183 = vst [vmem:[%s1170 + $0x60] sm:$0xff] %v1149
      %1184 = vst [vmem:[%s1170 + $0x68] sm:$0xff] %v1150
      %1185 = vst [vmem:[%s1170 + $0x70] sm:$0xff] %v1151
      %1186 = vst [vmem:[%s1170 + $0x78] sm:$0xff] %v1152
      %1187 = vst [vmem:[%s1170 + $0x80] sm:$0xff] %v1153
      %1188 = vst [vmem:[%s1170 + $0x88] sm:$0xff] %v1154
      %1189 = vst [vmem:[%s1170 + $0x90] sm:$0xff] %v1155
      %1190 = vst [vmem:[%s1170 + $0x98] sm:$0xff] %v1156
      %1191 = vst [vmem:[%s1170 + $0xa0] sm:$0xff] %v1157
      %1192 = vst [vmem:[%s1170 + $0xa8] sm:$0xff] %v1158
      %1193 = vst [vmem:[%s1170 + $0xb0] sm:$0xff] %v1159
      %1194 = vst [vmem:[%s1170 + $0xb8] sm:$0xff] %v1160
      %1195 = vst [vmem:[%s1170 + $0xc0] sm:$0xff] %v1161
      %1196 = vst [vmem:[%s1170 + $0xc8] sm:$0xff] %v1162
      %1197 = vst [vmem:[%s1170 + $0xd0] sm:$0xff] %v1163
      %1198 = vst [vmem:[%s1170 + $0xd8] sm:$0xff] %v1164
      %1199 = vst [vmem:[%s1170 + $0xe0] sm:$0xff] %v1165
      %1200 = vst [vmem:[%s1170 + $0xe8] sm:$0xff] %v1166
      %1201 = vst [vmem:[%s1170 + $0xf0] sm:$0xff] %v1167
      %1202 = vst [vmem:[%s1170 + $0xf8] sm:$0xff] %v1168
      %s1203 = smul.u32 16, %s21
      %p1204 = scmp.lt.s32.totalorder %s20, 1
      %s1205 = scalar_select %p1204, %s20, 1
      %p1206 = scmp.lt.s32.totalorder %s1203, 15
      %s1207 = scalar_select %p1206, %s1203, 15
      %s1208 = smul.addr %s1207, 2
      %s1209 = smul.addr %s1205, 32
      %s1210 = sadd.s32 %s1208, %s1209
      %s1211 = smul.addr %s1210, 8
      %s1212 = scalar_lea.vmem %s5, %s1211
      // Predicated region
      $region41: #{_lambda_.1} parent=39 // pred_check
        %p1213 = pneg %p165
      $region42: #{_lambda_.1} parent=39 // pred_check_branch
        %1215 = sbr.rel (%p1213) target = $region44
      $region43: #{_lambda_.1} parent=39 // pred_region
        %s1216 = smul.u32 16, %s21
      $region44: #{_lambda_.1} parent=39 // pred_fallthru
        _
    $region40: #{_lambda_.1} parent=5 // pred_fallthru
      _
    %p1217 = scmp.le.s32.totalorder 2, %s11
    // Predicated region
    $region45: #{_lambda_.1} parent=5 // pred_check
      %p1218 = pneg %p1217
    $region46: #{_lambda_.1} parent=5 // pred_check_branch
      %1220 = sbr.rel (%p1218) target = $region48
    $region47: #{_lambda_.1} parent=5 // pred_region
      %s1221 = ssub.s32 %s11, 2
      // Predicated region
      $region49: #{_lambda_.1} parent=47 // pred_check
        %p1222 = pneg %p171
      $region50: #{_lambda_.1} parent=47 // pred_check_branch
        %1224 = sbr.rel (%p1222) target = $region52
      $region51: #{_lambda_.1} parent=47 // pred_region
        %s1225 = smul.u32 16, %s23
        %p1226 = scmp.lt.s32.totalorder %s22, 1
        %s1227 = scalar_select %p1226, %s22, 1
        %p1228 = scmp.lt.s32.totalorder %s1225, 15
        %s1229 = scalar_select %p1228, %s1225, 15
        %s1230 = smul.addr %s1229, 2
        %s1231 = smul.addr %s1227, 32
        %s1232 = sadd.s32 %s1230, %s1231
        %s1233 = smul.addr %s1232, 8
        %s1234 = scalar_lea.vmem %s5, %s1233
      $region52: #{_lambda_.1} parent=47 // pred_fallthru
        _
    $region48: #{_lambda_.1} parent=5 // pred_fallthru
      _
  $region6: #{_lambda_.1} parent=0 // loop_footer
    %s15 = sadd.s32 1, %s11
  $region7: #{_lambda_.1} parent=0 // loop_footer_branch
    %10 = sbr.rel target = $region3
  $region8: #{_lambda_.1} parent=0 // loop_exit
    _

</llo_original>
